<compile_context>
chip_gen: v7x
topology: tpu7x:2x2x1
jax: 0.10.0
libtpu: 0.0.40
codegen_flags: <defaults>
</compile_context>

<pallas_src>
import functools

import jax
import jax.numpy as jnp
from jax.experimental import pallas as pl
from jax.experimental.pallas import tpu as pltpu

LANE = 128
SUBLANE = 8


def _round_up(x, m):
    return ((x + m - 1) // m) * m


def _pick_tile(n, cap, granule):
    """Largest tile <= cap (multiple of `granule`) that minimizes padding of n."""
    n = max(int(n), 1)
    n_tiles = -(-n // cap)                 # cdiv(n, cap)
    return _round_up(-(-n // n_tiles), granule)


# ----------------------------- Pallas kernel -------------------------------

def _gcn_kernel(a_ref, x_ref, w_ref, b_ref, o_ref, acc_ref, *, tk, x_resident):
    """grid = (row_tiles, k_tiles); acc accumulates (A_hat @ X) per row tile."""
    k = pl.program_id(1)

    @pl.when(k == 0)
    def _init():
        acc_ref[...] = jnp.zeros_like(acc_ref)

    if x_resident:
        # X lives fully in VMEM; slice the k-th reduction chunk in place.
        start = pl.multiple_of(k * tk, tk)
        x_tile = x_ref[pl.ds(start, tk), :]
    else:
        x_tile = x_ref[...]

    # Dominant term: (tm, tk) @ (tk, F_pad) -- bf16 operands, f32 accumulation.
    acc_ref[...] += jnp.dot(a_ref[...], x_tile,
                            preferred_element_type=jnp.float32)

    @pl.when(k == pl.num_programs(1) - 1)
    def _finalize():
        # Once per row tile: (tm, F_pad) @ (F_pad, C_pad) on bf16 MXU operands
        # with f32 accumulation, then the bias add.
        o_ref[...] = (jnp.dot(acc_ref[...].astype(w_ref.dtype), w_ref[...],
                              preferred_element_type=jnp.float32)
                      + b_ref[...])


# --------------------------- jitted forward glue ---------------------------

@functools.partial(jax.jit, static_argnums=(4, 5))
def _gcn_forward_impl(edge_index, x, w, b, tm_max, tk_max):
    compute_dtype = jnp.bfloat16
    N, F = x.shape
    C = w.shape[1]

    F_pad = _round_up(F, LANE)
    C_pad = _round_up(C, LANE)
    tm = _pick_tile(N, tm_max, SUBLANE)    # row tile (sublane axis of A_hat)
    tk = _pick_tile(N, tk_max, LANE)       # reduction tile (lane axis of A_hat)
    Nr = _round_up(N, tm)
    Nc = _round_up(N, tk)

    # ---- fused glue: build A_hat directly at the padded shape (jit fuses the
    # zero-init / pad / cast with the scatter; padded rows/cols stay zero) ----
    src = edge_index[0]
    dst = edge_index[1]
    loop = jnp.arange(N, dtype=edge_index.dtype)
    src = jnp.concatenate([src, loop])     # self loops appended unconditionally
    dst = jnp.concatenate([dst, loop])     # (matches PyG add_self_loops default)
    deg = jnp.zeros((N,), jnp.float32).at[dst].add(1.0)
    dinv = jnp.where(deg > 0, 1.0 / jnp.sqrt(deg), 0.0)
    norm = dinv[src] * dinv[dst]
    a_p = (jnp.zeros((Nr, Nc), jnp.float32).at[dst, src].add(norm)
           ).astype(compute_dtype)

    x_p = jnp.zeros((Nc, F_pad), compute_dtype).at[:N, :F].set(
        x.astype(compute_dtype))
    w_p = jnp.zeros((F_pad, C_pad), compute_dtype).at[:F, :C].set(
        w.astype(compute_dtype))
    b_p = jnp.zeros((1, C_pad), jnp.float32).at[0, :C].set(
        b.astype(jnp.float32))

    # Resident X while it fits comfortably in VMEM; stream per-k otherwise.
    x_resident = (Nc * F_pad * 2) <= (8 << 20)
    if x_resident:
        x_spec = pl.BlockSpec((Nc, F_pad), lambda i, k: (0, 0))   # DMAed once
        x_vmem = Nc * F_pad * 2
    else:
        x_spec = pl.BlockSpec((tk, F_pad), lambda i, k: (k, 0))   # streamed
        x_vmem = 2 * tk * F_pad * 2

    grid = (Nr // tm, Nc // tk)

    vmem_bytes = (2 * tm * tk * 2          # A_hat tiles, double-buffered bf16
                  + x_vmem                 # X
                  + 2 * tm * C_pad * 4     # output tiles, double-buffered f32
                  + tm * F_pad * 4         # f32 accumulator
                  + F_pad * C_pad * 2      # W (resident, bf16)
                  + C_pad * 4)             # bias (resident, f32)
    vmem_limit = max(32 << 20, int(vmem_bytes * 3 // 2))

    kernel = functools.partial(_gcn_kernel, tk=tk, x_resident=x_resident)

    out_p = pl.pallas_call(
        kernel,
        out_shape=jax.ShapeDtypeStruct((Nr, C_pad), jnp.float32),
        grid_spec=pltpu.PrefetchScalarGridSpec(
            num_scalar_prefetch=0,
            grid=grid,
            in_specs=[
                pl.BlockSpec((tm, tk), lambda i, k: (i, k)),        # A_hat tile
                x_spec,                                             # X
                pl.BlockSpec((F_pad, C_pad), lambda i, k: (0, 0)),  # W resident
                pl.BlockSpec((1, C_pad), lambda i, k: (0, 0)),      # bias resident
            ],
            out_specs=pl.BlockSpec((tm, C_pad), lambda i, k: (i, 0)),
            scratch_shapes=[pltpu.VMEM((tm, F_pad), jnp.float32)],
        ),
        compiler_params=pltpu.CompilerParams(
            dimension_semantics=("parallel", "arbitrary"),
            vmem_limit_bytes=vmem_limit,
        ),
    )(a_p, x_p, w_p, b_p)

    return out_p[:N, :C]


def gcn_forward(edge_index, x, w, b, *, tm_max=512, tk_max=2048):
    """out = A_hat(edge_index) @ X @ W + b, end-to-end jitted."""
    return _gcn_forward_impl(edge_index, x, w, b, int(tm_max), int(tk_max))


# ------------------------- reference helpers (f32) --------------------------

def build_normalized_adjacency(edge_index, num_nodes):
    """Dense A_hat[i, j] = 1/sqrt(deg_i*deg_j) for edge j->i (with self loops)."""
    src = edge_index[0]
    dst = edge_index[1]
    loop = jnp.arange(num_nodes, dtype=edge_index.dtype)
    src = jnp.concatenate([src, loop])
    dst = jnp.concatenate([dst, loop])
    deg = jnp.zeros((num_nodes,), jnp.float32).at[dst].add(1.0)
    dinv = jnp.where(deg > 0, 1.0 / jnp.sqrt(deg), 0.0)
    norm = dinv[src] * dinv[dst]
    return jnp.zeros((num_nodes, num_nodes), jnp.float32).at[dst, src].add(norm)


class ChemblGCNConvPallas:
    """Mirrors ChemblGCNConv.forward: data = (node_features, graph_obj)."""

    def __init__(self, in_channels, out_channels, key):
        # Lazy in_channels resolved at construction here (synthetic glorot init).
        kw, _ = jax.random.split(key)
        limit = jnp.sqrt(6.0 / (in_channels + out_channels))
        self.weight = jax.random.uniform(
            kw, (in_channels, out_channels), jnp.float32, -limit, limit)
        self.bias = jnp.zeros((out_channels,), jnp.float32)

    def __call__(self, data):
        x, graph = data[0], data[1]
        out = gcn_forward(graph["edge_index"], x, self.weight, self.bias)
        return (out, data[1])


# --------------------------------- main -------------------------------------

if __name__ == "__main__":
    key = jax.random.PRNGKey(0)
    k_x, k_e, k_w, k_x2, k_e2, k_b2 = jax.random.split(key, 6)

    # Small ChEMBL-like molecule graph.
    N = 16          # nodes
    F_IN = 8        # input feature dim (lazily inferred in the torch module)
    C_OUT = 32      # out_channels
    E = 40          # edges

    x = jax.random.normal(k_x, (N, F_IN), jnp.float32)
    edge_index = jax.random.randint(k_e, (2, E), 0, N, jnp.int32)
    graph = {"edge_index": edge_index}

    module = ChemblGCNConvPallas(F_IN, C_OUT, k_w)
    out, passthrough = module((x, graph))
    out = jax.block_until_ready(out)

    # Reference in plain f32 (HIGHEST precision). The kernel uses bf16 A_hat/X/W
    # (f32 accumulation), so compare at bf16-appropriate tolerance.
    hp = jax.lax.Precision.HIGHEST
    a_hat = build_normalized_adjacency(edge_index, N)
    ref = (jnp.dot(a_hat, jnp.dot(x, module.weight, precision=hp), precision=hp)
           + module.bias[None, :])
    assert out.shape == (N, C_OUT)
    assert jnp.allclose(out, ref, atol=3e-2, rtol=3e-2), \
        float(jnp.max(jnp.abs(out - ref)))
    assert passthrough is graph

    # Second check: multi-tile grid with awkward N (exercises padding-aware
    # tile selection, the resident-X dynamic slicing, the accumulator across
    # several k tiles, and a nonzero bias in the finalize branch).
    N2, E2 = 600, 2400
    x2 = jax.random.normal(k_x2, (N2, F_IN), jnp.float32)
    e2 = jax.random.randint(k_e2, (2, E2), 0, N2, jnp.int32)
    b2 = 0.1 * jax.random.normal(k_b2, (C_OUT,), jnp.float32)
    out2 = gcn_forward(e2, x2, module.weight, b2, tm_max=128, tk_max=256)
    out2 = jax.block_until_ready(out2)
    a2 = build_normalized_adjacency(e2, N2)
    ref2 = (jnp.dot(a2, jnp.dot(x2, module.weight, precision=hp), precision=hp)
            + b2[None, :])
    assert out2.shape == (N2, C_OUT)
    assert jnp.allclose(out2, ref2, atol=3e-2, rtol=3e-2), \
        float(jnp.max(jnp.abs(out2 - ref2)))

    print("KERNEL_OK")
</pallas_src>

<mosaic_0001>
module attributes {stable_mosaic.version = 11 : i64} {
  func.func @_gcn_kernel(%arg0: i32, %arg1: i32, %arg2: memref<16x128xbf16, #tpu.memory_space<vmem>>, %arg3: memref<128x128xbf16, #tpu.memory_space<vmem>>, %arg4: memref<128x128xbf16, #tpu.memory_space<vmem>>, %arg5: memref<1x128xf32, #tpu.memory_space<vmem>>, %arg6: memref<16x128xf32, #tpu.memory_space<vmem>>, %arg7: memref<16x128xf32, #tpu.memory_space<vmem>>) attributes {dimension_semantics = [#tpu.dimension_semantics<parallel>, #tpu.dimension_semantics<arbitrary>], iteration_bounds = array<i64: 1, 1>, scalar_prefetch = 0 : i64, scratch_operands = 1 : i64, tpu.core_type = #tpu.core_type<tc>, window_params = [{transform_indices = @transform_0, window_bounds = array<i64: 16, 128>}, {pipeline_mode = #tpu.pipeline_mode<synchronous>, transform_indices = @transform_1, window_bounds = array<i64: 128, 128>}, {pipeline_mode = #tpu.pipeline_mode<synchronous>, transform_indices = @transform_2, window_bounds = array<i64: 128, 128>}, {pipeline_mode = #tpu.pipeline_mode<synchronous>, transform_indices = @transform_3, window_bounds = array<i64: 1, 128>}, {transform_indices = @transform_4, window_bounds = array<i64: 16, 128>}]} {
    %c0_i32 = arith.constant 0 : i32
    %0 = arith.cmpi eq, %arg1, %c0_i32 : i32
    %1 = arith.extui %0 : i1 to i32
    %c0_i32_0 = arith.constant 0 : i32
    %2 = arith.cmpi ne, %1, %c0_i32_0 : i32
    scf.if %2 {
      %cst_9 = arith.constant 0.000000e+00 : f32
      %15 = vector.broadcast %cst_9 : f32 to vector<16x128xf32>
      %c0_10 = arith.constant 0 : index
      %c0_11 = arith.constant 0 : index
      %16 = vector.load %arg7[%c0_10, %c0_11] : memref<16x128xf32, #tpu.memory_space<vmem>>, vector<16x128xf32>
      tpu.vector_store %arg7[%c0_10, %c0_11], %15 {strides = array<i32>} : memref<16x128xf32, #tpu.memory_space<vmem>>, vector<16x128xf32>,
    } else {
    }
    %c128_i32 = arith.constant 128 : i32
    %3 = arith.muli %arg1, %c128_i32 : i32
    %4 = tpu.assume_multiple %3, 128 : i32
    %5 = arith.index_cast %4 : i32 to index
    %c0 = arith.constant 0 : index
    %6 = vector.load %arg3[%5, %c0] : memref<128x128xbf16, #tpu.memory_space<vmem>>, vector<128x128xbf16>
    %c0_1 = arith.constant 0 : index
    %c0_2 = arith.constant 0 : index
    %7 = vector.load %arg7[%c0_1, %c0_2] : memref<16x128xf32, #tpu.memory_space<vmem>>, vector<16x128xf32>
    %c0_3 = arith.constant 0 : index
    %c0_4 = arith.constant 0 : index
    %8 = vector.load %arg2[%c0_3, %c0_4] : memref<16x128xbf16, #tpu.memory_space<vmem>>, vector<16x128xbf16>
    %cst = arith.constant dense<0.000000e+00> : vector<16x128xf32>
    %9 = tpu.matmul %8, %6, %cst {dimension_numbers = #tpu.dot_dimension_numbers<[1], [0], [0], [1], [0, 0, 1, 1], [], []>} : vector<16x128xbf16>, vector<128x128xbf16>, vector<16x128xf32> -> vector<16x128xf32>
    %10 = arith.addf %7, %9 : vector<16x128xf32>
    %c0_5 = arith.constant 0 : index
    %c0_6 = arith.constant 0 : index
    %11 = vector.load %arg7[%c0_5, %c0_6] : memref<16x128xf32, #tpu.memory_space<vmem>>, vector<16x128xf32>
    tpu.vector_store %arg7[%c0_5, %c0_6], %10 {strides = array<i32>} : memref<16x128xf32, #tpu.memory_space<vmem>>, vector<16x128xf32>,
    %c0_i32_7 = arith.constant 0 : i32
    %12 = arith.cmpi eq, %arg1, %c0_i32_7 : i32
    %13 = arith.extui %12 : i1 to i32
    %c0_i32_8 = arith.constant 0 : i32
    %14 = arith.cmpi ne, %13, %c0_i32_8 : i32
    scf.if %14 {
      %c0_9 = arith.constant 0 : index
      %c0_10 = arith.constant 0 : index
      %15 = vector.load %arg7[%c0_9, %c0_10] : memref<16x128xf32, #tpu.memory_space<vmem>>, vector<16x128xf32>
      %16 = arith.truncf %15 : vector<16x128xf32> to vector<16x128xbf16>
      %c0_11 = arith.constant 0 : index
      %c0_12 = arith.constant 0 : index
      %17 = vector.load %arg4[%c0_11, %c0_12] : memref<128x128xbf16, #tpu.memory_space<vmem>>, vector<128x128xbf16>
      %cst_13 = arith.constant dense<0.000000e+00> : vector<16x128xf32>
      %18 = tpu.matmul %16, %17, %cst_13 {dimension_numbers = #tpu.dot_dimension_numbers<[1], [0], [0], [1], [0, 0, 1, 1], [], []>} : vector<16x128xbf16>, vector<128x128xbf16>, vector<16x128xf32> -> vector<16x128xf32>
      %c0_14 = arith.constant 0 : index
      %c0_15 = arith.constant 0 : index
      %19 = vector.load %arg5[%c0_14, %c0_15] : memref<1x128xf32, #tpu.memory_space<vmem>>, vector<1x128xf32>
      %20 = vector.broadcast %19 : vector<1x128xf32> to vector<16x128xf32>
      %21 = arith.addf %18, %20 : vector<16x128xf32>
      %c0_16 = arith.constant 0 : index
      %c0_17 = arith.constant 0 : index
      %22 = vector.load %arg6[%c0_16, %c0_17] : memref<16x128xf32, #tpu.memory_space<vmem>>, vector<16x128xf32>
      tpu.vector_store %arg6[%c0_16, %c0_17], %21 {strides = array<i32>} : memref<16x128xf32, #tpu.memory_space<vmem>>, vector<16x128xf32>,
    } else {
    }
    return
  }
  func.func @transform_0(%arg0: i32, %arg1: i32) -> (i32, i32) {
    %c0_i32 = arith.constant 0 : i32
    return %arg0, %arg1 : i32, i32
  }
  func.func @transform_1(%arg0: i32, %arg1: i32) -> (i32, i32) {
    %c0_i32 = arith.constant 0 : i32
    %c0_i32_0 = arith.constant 0 : i32
    %c0_i32_1 = arith.constant 0 : i32
    return %c0_i32, %c0_i32_0 : i32, i32
  }
  func.func @transform_2(%arg0: i32, %arg1: i32) -> (i32, i32) {
    %c0_i32 = arith.constant 0 : i32
    %c0_i32_0 = arith.constant 0 : i32
    %c0_i32_1 = arith.constant 0 : i32
    return %c0_i32, %c0_i32_0 : i32, i32
  }
  func.func @transform_3(%arg0: i32, %arg1: i32) -> (i32, i32) {
    %c0_i32 = arith.constant 0 : i32
    %c0_i32_0 = arith.constant 0 : i32
    %c0_i32_1 = arith.constant 0 : i32
    return %c0_i32, %c0_i32_0 : i32, i32
  }
  func.func @transform_4(%arg0: i32, %arg1: i32) -> (i32, i32) {
    %c0_i32 = arith.constant 0 : i32
    %c0_i32_0 = arith.constant 0 : i32
    return %arg0, %c0_i32 : i32, i32
  }
}

</mosaic_0001>

<llo_original>
// kernel: mul.1
$region0: #{mul.1}
  #allocation0 [shape = 's32[1]{0}', space=sflag, size = 0x4, scoped, tag = 'scoped memory for mul.1']
  %s0 = inlined_call_operand.vmem [shape: f32[56], index: 0, kind: input, shape index: {}]
  %s1 = inlined_call_operand.vmem [shape: f32[56], index: 1, kind: input, shape index: {}]
  %s2 = inlined_call_operand.vmem [shape: f32[56], index: 2, kind: output, shape index: {}]
  %v3 = vld [vmem:[%s0] sm:$0x1]
  %v4 = vld [vmem:[%s1] sm:$0x1]
  %5 = xla_tuple %v3, %v4
  %6 = xla_tuple %5
  %v7 = vmul.f32 %v3, %v4
  %8 = xla_tuple %v7
  %9 = vst [vmem:[%s2] sm:$0x1] %v7

// kernel: _gcn_forward_impl.1
$region0: #{_gcn_forward_impl.1}
  #allocation0 [shape = 'u32[]', space=smem, size = 0x4, offset = 0x4, fixed_abs, tag = 'smem constant byte address 0x4 - core index']
  #allocation1 [shape = 'u32[144,128]{1,0:T(1,128)}', space=vmem, size = 0x12000, scoped, tag = 'internal scratch']
  #allocation2 [shape = 'f32[16,128]{1,0:T(8,128)}', space=vmem, size = 0x2000, scoped, tag = 'scratch operand']
  %s0 = inlined_call_operand.vmem [shape: bf16[16,128], index: 0, kind: input, shape index: {}]
  %s1 = inlined_call_operand.vmem [shape: bf16[128,128], index: 1, kind: input, shape index: {}]
  %s2 = inlined_call_operand.vmem [shape: bf16[128,128], index: 2, kind: input, shape index: {}]
  %s3 = inlined_call_operand.vmem [shape: f32[1,128], index: 3, kind: input, shape index: {}]
  %s4 = inlined_call_operand.hbm [shape: f32[16,128], index: 4, kind: output, shape index: {}]
  %s5 = sld [smem:[#allocation0]]
  $region34: #{_gcn_forward_impl.1} parent=0
    _
  %s7 = ssub.s32 1, %s5
  %s8 = scalar_select 0, %s7, %s5
  $region1: #{_gcn_forward_impl.1} parent=0
    #allocation3 [shape = 'u8[8192]{0}', space=vmem, size = 0x2000, scoped, tag = 'output window, operand 0, single buffered']
    #allocation4 [shape = 's32[1]{0}', space=sflag, size = 0x4, scoped, tag = 'scoped memory for _gcn_forward_impl.1']
    %9 = vsyncpa [#allocation4], 0
    // Predicated region
    $region2: #{_gcn_forward_impl.1} parent=1 // pred_check
      _
    $region3: #{_gcn_forward_impl.1} parent=1 // pred_check_branch
      %11 = sbr.rel (0) target = $region5
    $region4: #{_gcn_forward_impl.1} parent=1 // pred_region
      _
    $region5: #{_gcn_forward_impl.1} parent=1 // pred_fallthru
      _
    // Predicated region
    $region6: #{_gcn_forward_impl.1} parent=1 // pred_check
      _
    $region7: #{_gcn_forward_impl.1} parent=1 // pred_check_branch
      %13 = sbr.rel (0) target = $region9
    $region8: #{_gcn_forward_impl.1} parent=1 // pred_region
      _
    $region9: #{_gcn_forward_impl.1} parent=1 // pred_fallthru
      _
    // Predicated region
    $region10: #{_gcn_forward_impl.1} parent=1 // pred_check
      _
    $region11: #{_gcn_forward_impl.1} parent=1 // pred_check_branch
      %15 = sbr.rel (0) target = $region13
    $region12: #{_gcn_forward_impl.1} parent=1 // pred_region
      _
    $region13: #{_gcn_forward_impl.1} parent=1 // pred_fallthru
      _
    // Predicated region
    $region14: #{_gcn_forward_impl.1} parent=1 // pred_check
      _
    $region15: #{_gcn_forward_impl.1} parent=1 // pred_check_branch
      %17 = sbr.rel (0) target = $region17
    $region16: #{_gcn_forward_impl.1} parent=1 // pred_region
      _
    $region17: #{_gcn_forward_impl.1} parent=1 // pred_fallthru
      _
    %p19 = scmp.eq.s32.totalorder 0, 0
    // Predicated region
    $region18: #{_gcn_forward_impl.1} parent=1 // pred_check
      %p20 = pneg %p19
    $region19: #{_gcn_forward_impl.1} parent=1 // pred_check_branch
      %22 = sbr.rel (%p20) target = $region21
    $region20: #{_gcn_forward_impl.1} parent=1 // pred_region
      %23 = vst [vmem:[#allocation2] sm:$0xff] 0.0
      %24 = vst [vmem:[#allocation2 + $0x8] sm:$0xff] 0.0
    $region21: #{_gcn_forward_impl.1} parent=1 // pred_fallthru
      _
    %s25 = smul.u32 0, 128
    %s26 = sshra.s32 %s25, 3
    %s27 = sand.u32 %s25, 7
    %s28 = smul.addr %s26, 4
    %s29 = scalar_lea.vmem %s1, %s28
    %v30 = vld [vmem:[%s29] sm:$0xf]
    %v31 = vld [vmem:[%s29 + $0x4] sm:$0xf]
    %v32 = vld [vmem:[%s29 + $0x8] sm:$0xf]
    %v33 = vld [vmem:[%s29 + $0xc] sm:$0xf]
    %v34 = vld [vmem:[%s29 + $0x10] sm:$0xf]
    %v35 = vld [vmem:[%s29 + $0x14] sm:$0xf]
    %v36 = vld [vmem:[%s29 + $0x18] sm:$0xf]
    %v37 = vld [vmem:[%s29 + $0x1c] sm:$0xf]
    %v38 = vld [vmem:[%s29 + $0x20] sm:$0xf]
    %v39 = vld [vmem:[%s29 + $0x24] sm:$0xf]
    %v40 = vld [vmem:[%s29 + $0x28] sm:$0xf]
    %v41 = vld [vmem:[%s29 + $0x2c] sm:$0xf]
    %v42 = vld [vmem:[%s29 + $0x30] sm:$0xf]
    %v43 = vld [vmem:[%s29 + $0x34] sm:$0xf]
    %v44 = vld [vmem:[%s29 + $0x38] sm:$0xf]
    %v45 = vld [vmem:[%s29 + $0x3c] sm:$0xf]
    %v46 = vld [vmem:[#allocation2] sm:$0xff]
    %v47 = vld [vmem:[#allocation2 + $0x8] sm:$0xff]
    %v48 = vld [vmem:[%s0] sm:$0xf]
    %v49 = vld [vmem:[%s0 + $0x4] sm:$0xf]
    %v52 = vunpack.c.l.b16 %v48
    %v53 = vunpack.c.l.b16 %v49
    %v54 = vpack.c.b16 %v53, %v52
    %v72 = vunpack.c.l.b16 %v30
    %v73 = vunpack.c.l.b16 %v31
    %v74 = vunpack.c.l.b16 %v32
    %v75 = vunpack.c.l.b16 %v33
    %v76 = vunpack.c.l.b16 %v34
    %v77 = vunpack.c.l.b16 %v35
    %v78 = vunpack.c.l.b16 %v36
    %v79 = vunpack.c.l.b16 %v37
    %v80 = vunpack.c.l.b16 %v38
    %v81 = vunpack.c.l.b16 %v39
    %v82 = vunpack.c.l.b16 %v40
    %v83 = vunpack.c.l.b16 %v41
    %v84 = vunpack.c.l.b16 %v42
    %v85 = vunpack.c.l.b16 %v43
    %v86 = vunpack.c.l.b16 %v44
    %v87 = vunpack.c.l.b16 %v45
    %v88 = vpack.c.b16 %v73, %v72
    %v89 = vpack.c.b16 %v75, %v74
    %v90 = vpack.c.b16 %v77, %v76
    %v91 = vpack.c.b16 %v79, %v78
    %v92 = vpack.c.b16 %v81, %v80
    %v93 = vpack.c.b16 %v83, %v82
    %v94 = vpack.c.b16 %v85, %v84
    %v95 = vpack.c.b16 %v87, %v86
    %104 = vmatprep.subr.bf16.mxu0 0
    %105 = vmatpush1.bf16.msra.mxu0 %v88
    %106 = vmatprep.subr.bf16.mxu0 0
    %107 = vmatpush1.bf16.msra.mxu0 %v89
    %108 = vmatprep.subr.bf16.mxu0 0
    %109 = vmatpush1.bf16.msra.mxu0 %v90
    %110 = vmatprep.subr.bf16.mxu0 0
    %111 = vmatpush1.bf16.msra.mxu0 %v91
    %112 = vmatprep.subr.bf16.mxu0 0
    %113 = vmatpush1.bf16.msra.mxu0 %v92
    %114 = vmatprep.subr.bf16.mxu0 0
    %115 = vmatpush1.bf16.msra.mxu0 %v93
    %116 = vmatprep.subr.bf16.mxu0 0
    %117 = vmatpush1.bf16.msra.mxu0 %v94
    %118 = vmatprep.subr.bf16.mxu0 0
    %119 = vmatpush1.bf16.msra.mxu0 %v95
    %120 = vmatprep.subr.bf16.mxu0 0
    %121 = vmatpush1.bf16.msra.mxu0 0
    %122 = vmatprep.subr.bf16.mxu0 0
    %123 = vmatpush1.bf16.msra.mxu0 0
    %124 = vmatprep.subr.bf16.mxu0 0
    %125 = vmatpush1.bf16.msra.mxu0 0
    %126 = vmatprep.subr.bf16.mxu0 0
    %127 = vmatpush1.bf16.msra.mxu0 0
    %128 = vmatprep.subr.bf16.mxu0 0
    %129 = vmatpush1.bf16.msra.mxu0 0
    %130 = vmatprep.subr.bf16.mxu0 0
    %131 = vmatpush1.bf16.msra.mxu0 0
    %132 = vmatprep.subr.bf16.mxu0 0
    %133 = vmatpush1.bf16.msra.mxu0 0
    %134 = vmatprep.subr.bf16.mxu0 0
    %135 = vmatpush1.bf16.msra.mxu0 0
    %136 = vmatprep.mubr.bf16.mxu0 0
    %137 = vmatmul.mubr.bf16.gmra.mrb[0].mxu0 %v54
    %v138 = vpop.f32.mrb[0].mxu0
    %v139 = vadd.f32 0.0, %v138
    %v140 = vpop.f32.mrb[0].mxu0
    %v141 = vpop.f32.mrb[0].mxu0
    %v142 = vadd.f32 0.0, %v141
    %v143 = vpop.f32.mrb[0].mxu0
    %144 = vdwg.mxu0
    %v145 = vadd.f32 %v46, %v139
    %v146 = vadd.f32 %v47, %v142
    %147 = vst [vmem:[#allocation2] sm:$0xff] %v145
    %148 = vst [vmem:[#allocation2 + $0x8] sm:$0xff] %v146
    // Predicated region
    $region22: #{_gcn_forward_impl.1} parent=1 // pred_check
      %p149 = pneg %p19
    $region23: #{_gcn_forward_impl.1} parent=1 // pred_check_branch
      %151 = sbr.rel (%p149) target = $region25
    $region24: #{_gcn_forward_impl.1} parent=1 // pred_region
      %v152 = vld [vmem:[#allocation2] sm:$0xff]
      %v153 = vld [vmem:[#allocation2 + $0x8] sm:$0xff]
      %v154 = vpack.c.bf16 %v153, %v152
      %v155 = vld [vmem:[%s2] sm:$0xf]
      %v156 = vld [vmem:[%s2 + $0x4] sm:$0xf]
      %v157 = vld [vmem:[%s2 + $0x8] sm:$0xf]
      %v158 = vld [vmem:[%s2 + $0xc] sm:$0xf]
      %v159 = vld [vmem:[%s2 + $0x10] sm:$0xf]
      %v160 = vld [vmem:[%s2 + $0x14] sm:$0xf]
      %v161 = vld [vmem:[%s2 + $0x18] sm:$0xf]
      %v162 = vld [vmem:[%s2 + $0x1c] sm:$0xf]
      %v163 = vld [vmem:[%s2 + $0x20] sm:$0xf]
      %v164 = vld [vmem:[%s2 + $0x24] sm:$0xf]
      %v165 = vld [vmem:[%s2 + $0x28] sm:$0xf]
      %v166 = vld [vmem:[%s2 + $0x2c] sm:$0xf]
      %v167 = vld [vmem:[%s2 + $0x30] sm:$0xf]
      %v168 = vld [vmem:[%s2 + $0x34] sm:$0xf]
      %v169 = vld [vmem:[%s2 + $0x38] sm:$0xf]
      %v170 = vld [vmem:[%s2 + $0x3c] sm:$0xf]
      %v171 = vld [vmem:[%s3] sm:$0x1]
      %v173 = vlaneseq
      %v174 = vshrl.u32 %v173, 7
      %v175 = vsub.s32 0, %v174
      %v176 = vrot.slane %v171, %v175
      %v194 = vunpack.c.l.b16 %v155
      %v195 = vunpack.c.l.b16 %v156
      %v196 = vunpack.c.l.b16 %v157
      %v197 = vunpack.c.l.b16 %v158
      %v198 = vunpack.c.l.b16 %v159
      %v199 = vunpack.c.l.b16 %v160
      %v200 = vunpack.c.l.b16 %v161
      %v201 = vunpack.c.l.b16 %v162
      %v202 = vunpack.c.l.b16 %v163
      %v203 = vunpack.c.l.b16 %v164
      %v204 = vunpack.c.l.b16 %v165
      %v205 = vunpack.c.l.b16 %v166
      %v206 = vunpack.c.l.b16 %v167
      %v207 = vunpack.c.l.b16 %v168
      %v208 = vunpack.c.l.b16 %v169
      %v209 = vunpack.c.l.b16 %v170
      %v210 = vpack.c.b16 %v195, %v194
      %v211 = vpack.c.b16 %v197, %v196
      %v212 = vpack.c.b16 %v199, %v198
      %v213 = vpack.c.b16 %v201, %v200
      %v214 = vpack.c.b16 %v203, %v202
      %v215 = vpack.c.b16 %v205, %v204
      %v216 = vpack.c.b16 %v207, %v206
      %v217 = vpack.c.b16 %v209, %v208
      %226 = vmatprep.subr.bf16.mxu0 0
      %227 = vmatpush1.bf16.msra.mxu0 %v210
      %228 = vmatprep.subr.bf16.mxu0 0
      %229 = vmatpush1.bf16.msra.mxu0 %v211
      %230 = vmatprep.subr.bf16.mxu0 0
      %231 = vmatpush1.bf16.msra.mxu0 %v212
      %232 = vmatprep.subr.bf16.mxu0 0
      %233 = vmatpush1.bf16.msra.mxu0 %v213
      %234 = vmatprep.subr.bf16.mxu0 0
      %235 = vmatpush1.bf16.msra.mxu0 %v214
      %236 = vmatprep.subr.bf16.mxu0 0
      %237 = vmatpush1.bf16.msra.mxu0 %v215
      %238 = vmatprep.subr.bf16.mxu0 0
      %239 = vmatpush1.bf16.msra.mxu0 %v216
      %240 = vmatprep.subr.bf16.mxu0 0
      %241 = vmatpush1.bf16.msra.mxu0 %v217
      %242 = vmatprep.subr.bf16.mxu0 0
      %243 = vmatpush1.bf16.msra.mxu0 0
      %244 = vmatprep.subr.bf16.mxu0 0
      %245 = vmatpush1.bf16.msra.mxu0 0
      %246 = vmatprep.subr.bf16.mxu0 0
      %247 = vmatpush1.bf16.msra.mxu0 0
      %248 = vmatprep.subr.bf16.mxu0 0
      %249 = vmatpush1.bf16.msra.mxu0 0
      %250 = vmatprep.subr.bf16.mxu0 0
      %251 = vmatpush1.bf16.msra.mxu0 0
      %252 = vmatprep.subr.bf16.mxu0 0
      %253 = vmatpush1.bf16.msra.mxu0 0
      %254 = vmatprep.subr.bf16.mxu0 0
      %255 = vmatpush1.bf16.msra.mxu0 0
      %256 = vmatprep.subr.bf16.mxu0 0
      %257 = vmatpush1.bf16.msra.mxu0 0
      %258 = vmatprep.mubr.bf16.mxu0 0
      %259 = vmatmul.mubr.bf16.gmra.mrb[0].mxu0 %v154
      %v260 = vpop.f32.mrb[0].mxu0
      %v261 = vadd.f32 %v176, %v260
      %v262 = vpop.f32.mrb[0].mxu0
      %v263 = vpop.f32.mrb[0].mxu0
      %v264 = vadd.f32 %v176, %v263
      %v265 = vpop.f32.mrb[0].mxu0
      %266 = vdwg.mxu0
      %267 = vst [vmem:[#allocation3] sm:$0xff] %v261
      %268 = vst [vmem:[#allocation3 + $0x8] sm:$0xff] %v264
    $region25: #{_gcn_forward_impl.1} parent=1 // pred_fallthru
      _
    // Predicated region
    $region26: #{_gcn_forward_impl.1} parent=1 // pred_check
      _
    $region27: #{_gcn_forward_impl.1} parent=1 // pred_check_branch
      %270 = sbr.rel (0) target = $region29
    $region28: #{_gcn_forward_impl.1} parent=1 // pred_region
      %s272 = ssub.s32 256, 256
      %273 = vsyncadd [#allocation4], %s272
      %s274 = sshll.u32 [#allocation3], 4
      %s275 = int_to_ptr.vmem [resolvable:$true] %s274
      %280 = dma.vmem_to_hbm [thread:$0]  %s275, 256, %s4, [#allocation4], 128, 128, 8
    $region29: #{_gcn_forward_impl.1} parent=1 // pred_fallthru
      _
    // Predicated region
    $region30: #{_gcn_forward_impl.1} parent=1 // pred_check
      _
    $region31: #{_gcn_forward_impl.1} parent=1 // pred_check_branch
      %282 = sbr.rel (0) target = $region33
    $region32: #{_gcn_forward_impl.1} parent=1 // pred_region
      %283 = dma.done [#allocation4], 256
    $region33: #{_gcn_forward_impl.1} parent=1 // pred_fallthru
      _
    %284 = vsyncpa [#allocation4], 1

</llo_original>
